<compile_context>
chip_gen: v7x
topology: tpu7x:2x2x1
jax: 0.10.0
libtpu: 0.0.40
codegen_flags: <defaults>
</compile_context>

<pallas_src>
import jax
import jax.numpy as jnp
from jax import lax
from jax.experimental import pallas as pl
from jax.experimental.pallas import tpu as pltpu

_LN_EPS = 1e-5  # PyTorch nn.LayerNorm default


def _round_up(x, m):
    return ((x + m - 1) // m) * m


def _cdiv(a, b):
    return -(-a // b)


def _masklm_kernel(x_ref, w1_ref, b1_ref, gamma_ref, beta_ref,
                   w2_ref, b2_ref, o_ref, h_ref):
    # Stage 1: dense(H->H) + ReLU + LayerNorm, computed once per row tile
    # (only at the first vocab tile) and cached in a bf16 VMEM scratch.
    @pl.when(pl.program_id(1) == 0)
    def _():
        # bf16 x bf16 -> f32 accumulation on the MXU (x @ W1^T pre-transposed).
        h = jnp.dot(x_ref[...], w1_ref[...],
                    preferred_element_type=jnp.float32)            # (TN, H)
        h = jnp.maximum(h + b1_ref[...], 0.0)                      # bias + ReLU
        mu = jnp.mean(h, axis=-1, keepdims=True)                   # LN in f32
        var = jnp.mean(jnp.square(h - mu), axis=-1, keepdims=True)
        h = (h - mu) * lax.rsqrt(var + _LN_EPS)
        h = h * gamma_ref[...] + beta_ref[...]
        h_ref[...] = h.astype(h_ref.dtype)                         # cache bf16

    # Stage 2: cached hidden (bf16) @ W2^T vocab tile (bf16), f32 accumulate.
    logits = jnp.dot(h_ref[...], w2_ref[...],
                     preferred_element_type=jnp.float32)           # (TN, TV)
    o_ref[...] = (logits + b2_ref[...]).astype(o_ref.dtype)


def mask_lm(X, pred_positions, w1, b1, gamma, beta, w2, b2,
            *, tile_n=512, tile_v=1024, out_dtype=None):
    """MaskLM forward.

    X:              (B, S, H)  encoder output
    pred_positions: (B, P)     int positions of masked tokens
    w1: (H, H), b1: (H,)       first Linear (PyTorch layout)
    gamma, beta: (H,)          LayerNorm affine
    w2: (V, H), b2: (V,)       vocab projection (PyTorch layout)
    returns (B, P, V)
    """
    B, S, H = X.shape
    P = pred_positions.shape[1]
    V = w2.shape[0]
    N = B * P
    out_dtype = X.dtype if out_dtype is None else out_dtype

    # --- gather masked positions (tiny, data-dependent) -> keep in XLA -----
    batch_idx = jnp.repeat(jnp.arange(B, dtype=jnp.int32), P)
    pos = pred_positions.reshape(-1).astype(jnp.int32)
    masked = X[batch_idx, pos].astype(jnp.bfloat16)                # (N, H)

    # --- one-time layout / precision prep (outside the hot loop) -----------
    # bf16 weights for the MXU; transposes folded here so the kernel does
    # plain (M,K)x(K,N) contractions with lane-dense vocab tiles.
    w1t = w1.T.astype(jnp.bfloat16)                                # (H, H)
    w2t = w2.T.astype(jnp.bfloat16)                                # (H, V)
    b1_2d = b1.reshape(1, H).astype(jnp.float32)
    gamma_2d = gamma.reshape(1, H).astype(jnp.float32)
    beta_2d = beta.reshape(1, H).astype(jnp.float32)

    # --- tile sizes & padding ----------------------------------------------
    n_rows = _round_up(N, 8)
    TILE_N = min(tile_n, n_rows)
    # Prefer >=2 row tiles (megacore sharding of the "parallel" axis on v7x)
    # by shrinking TILE_N instead of collapsing to a single row tile.
    if n_rows >= 16 and _cdiv(n_rows, TILE_N) == 1:
        TILE_N = _round_up(_cdiv(n_rows, 2), 8)
    N_pad = _round_up(N, TILE_N)

    TILE_V = min(tile_v, _round_up(V, 128))        # multiple of 128, lane-dense
    V_pad = _round_up(V, TILE_V)

    if N_pad != N:
        masked = jnp.pad(masked, ((0, N_pad - N), (0, 0)))
    if V_pad != V:
        w2t = jnp.pad(w2t, ((0, 0), (0, V_pad - V)))
        b2 = jnp.pad(b2, (0, V_pad - V))
    b2_2d = b2.reshape(1, V_pad).astype(jnp.float32)

    grid = (N_pad // TILE_N, V_pad // TILE_V)
    num_row_tiles = grid[0]

    # --- VMEM budget: actual footprint + headroom, never all of v7x's 64MiB -
    bf16, f32 = 2, 4
    out_elt = jnp.dtype(out_dtype).itemsize
    footprint = (
        2 * TILE_N * H * bf16              # masked-row tile (double-buffered)
        + H * H * bf16                     # W1^T (resident)
        + 3 * H * f32                      # b1 / gamma / beta
        + 2 * H * TILE_V * bf16            # W2^T vocab tile (double-buffered)
        + 2 * TILE_V * f32                 # b2 vocab tile
        + 2 * TILE_N * TILE_V * out_elt    # output tile (double-buffered)
        + TILE_N * H * bf16                # cached hidden scratch
    )
    vmem_limit = max(16 << 20, min(2 * footprint + (4 << 20), 48 << 20))

    # --- cost estimate: W2 is re-streamed once per ROW tile ------------------
    cost = pl.CostEstimate(
        flops=2 * N_pad * H * H + 2 * N_pad * H * V_pad,
        bytes_accessed=(
            N_pad * H * bf16                       # masked rows
            + H * H * bf16                         # W1^T (read once, resident)
            + 3 * H * f32                          # b1 / gamma / beta
            + num_row_tiles * V_pad * H * bf16     # W2^T per row tile
            + num_row_tiles * V_pad * f32          # b2 per row tile
            + N_pad * V_pad * out_elt              # logits written
        ),
        transcendentals=N_pad,                     # one rsqrt per masked row
    )

    def build_in_specs(resident_mode):
        def resident(shape):
            if resident_mode is None:
                return pl.BlockSpec(shape, lambda i, j: (0, 0))
            return pl.BlockSpec(shape, lambda i, j: (0, 0),
                                pipeline_mode=resident_mode)
        return [
            pl.BlockSpec((TILE_N, H), lambda i, j: (i, 0)),   # masked rows
            resident((H, H)),                                 # W1^T (resident)
            resident((1, H)),                                 # b1
            resident((1, H)),                                 # gamma
            resident((1, H)),                                 # beta
            pl.BlockSpec((H, TILE_V), lambda i, j: (0, j)),   # W2^T vocab tile
            pl.BlockSpec((1, TILE_V), lambda i, j: (0, j)),   # b2 vocab tile
        ]

    def run(in_specs):
        return pl.pallas_call(
            _masklm_kernel,
            out_shape=jax.ShapeDtypeStruct((N_pad, V_pad), out_dtype),
            grid=grid,
            in_specs=in_specs,
            out_specs=pl.BlockSpec((TILE_N, TILE_V), lambda i, j: (i, j)),
            scratch_shapes=[pltpu.VMEM((TILE_N, H), jnp.bfloat16)],
            compiler_params=pltpu.CompilerParams(
                dimension_semantics=("parallel", "arbitrary"),
                vmem_limit_bytes=int(vmem_limit),
            ),
            cost_estimate=cost,
        )(masked, w1t, b1_2d, gamma_2d, beta_2d, w2t, b2_2d)

    try:
        # Single-buffer the constant-index resident operands (reclaims VMEM,
        # most important on v7x's 64 MiB per-core VMEM).
        out = run(build_in_specs(pl.Buffered(1)))
    except Exception:
        # Fallback: default double-buffering if this JAX build rejects
        # Buffered(1) on the auto-pipelined pallas_call path.
        out = run(build_in_specs(None))

    return out[:N, :V].reshape(B, P, V)


def _ref_masklm(X, pred_positions, w1, b1, gamma, beta, w2, b2, eps=_LN_EPS):
    """Pure-JAX f32 reference matching the PyTorch module."""
    B, S, H = X.shape
    P = pred_positions.shape[1]
    batch_idx = jnp.repeat(jnp.arange(B), P)
    pos = pred_positions.reshape(-1)
    m = X[batch_idx, pos]
    h = jnp.maximum(m @ w1.T + b1, 0.0)
    mu = jnp.mean(h, axis=-1, keepdims=True)
    var = jnp.mean((h - mu) ** 2, axis=-1, keepdims=True)
    h = (h - mu) * lax.rsqrt(var + eps) * gamma + beta
    out = h @ w2.T + b2
    return out.reshape(B, P, -1)


if __name__ == "__main__":
    # Small shapes consistent with the spec's example:
    # tokens (2, 8), mlm_positions [[1,5,2],[6,1,5]], hidden=32, vocab=128.
    batch, seq, hidden, vocab, n_pred = 2, 8, 32, 128, 3

    key = jax.random.PRNGKey(0)
    kx, k1, k2, k3, k4, k5, k6 = jax.random.split(key, 7)

    # Stand-in for encoded_X (BERTEncoder output).
    X = jax.random.normal(kx, (batch, seq, hidden), jnp.float32)
    pred_positions = jnp.array([[1, 5, 2], [6, 1, 5]], dtype=jnp.int32)

    # nn.Linear default init U(-1/sqrt(in), 1/sqrt(in)); LN affine perturbed
    # away from identity so it is actually exercised.
    bound = 1.0 / (hidden ** 0.5)
    w1 = jax.random.uniform(k1, (hidden, hidden), jnp.float32, -bound, bound)
    b1 = jax.random.uniform(k2, (hidden,), jnp.float32, -bound, bound)
    gamma = 1.0 + 0.1 * jax.random.normal(k3, (hidden,), jnp.float32)
    beta = 0.1 * jax.random.normal(k4, (hidden,), jnp.float32)
    w2 = jax.random.uniform(k5, (vocab, hidden), jnp.float32, -bound, bound)
    b2 = jax.random.uniform(k6, (vocab,), jnp.float32, -bound, bound)

    out = mask_lm(X, pred_positions, w1, b1, gamma, beta, w2, b2)
    out = jax.block_until_ready(out)

    ref = _ref_masklm(X, pred_positions, w1, b1, gamma, beta, w2, b2)
    assert out.shape == (batch, n_pred, vocab)
    # bf16 inputs/weights with f32 accumulation -> relaxed tolerance vs f32 ref.
    max_err = float(jnp.max(jnp.abs(out - ref)))
    assert jnp.allclose(out, ref, atol=5e-2, rtol=5e-2), max_err

    print("KERNEL_OK")
</pallas_src>

<mosaic_0001>
module attributes {stable_mosaic.version = 11 : i64} {
  func.func @_masklm_kernel(%arg0: i32, %arg1: i32, %arg2: memref<8x32xbf16, #tpu.memory_space<vmem>>, %arg3: memref<32x32xbf16, #tpu.memory_space<vmem>>, %arg4: memref<1x32xf32, #tpu.memory_space<vmem>>, %arg5: memref<1x32xf32, #tpu.memory_space<vmem>>, %arg6: memref<1x32xf32, #tpu.memory_space<vmem>>, %arg7: memref<32x128xbf16, #tpu.memory_space<vmem>>, %arg8: memref<1x128xf32, #tpu.memory_space<vmem>>, %arg9: memref<8x128xf32, #tpu.memory_space<vmem>>, %arg10: memref<8x32xbf16, #tpu.memory_space<vmem>>) attributes {dimension_semantics = [#tpu.dimension_semantics<parallel>, #tpu.dimension_semantics<arbitrary>], iteration_bounds = array<i64: 1, 1>, scalar_prefetch = 0 : i64, scratch_operands = 1 : i64, tpu.core_type = #tpu.core_type<tc>, window_params = [{transform_indices = @transform_0, window_bounds = array<i64: 8, 32>}, {pipeline_mode = #tpu.pipeline_mode<synchronous>, transform_indices = @transform_1, window_bounds = array<i64: 32, 32>}, {pipeline_mode = #tpu.pipeline_mode<synchronous>, transform_indices = @transform_2, window_bounds = array<i64: 1, 32>}, {pipeline_mode = #tpu.pipeline_mode<synchronous>, transform_indices = @transform_3, window_bounds = array<i64: 1, 32>}, {pipeline_mode = #tpu.pipeline_mode<synchronous>, transform_indices = @transform_4, window_bounds = array<i64: 1, 32>}, {transform_indices = @transform_5, window_bounds = array<i64: 32, 128>}, {transform_indices = @transform_6, window_bounds = array<i64: 1, 128>}, {transform_indices = @transform_7, window_bounds = array<i64: 8, 128>}]} {
    %c0_i32 = arith.constant 0 : i32
    %0 = arith.cmpi eq, %arg1, %c0_i32 : i32
    %1 = arith.extui %0 : i1 to i32
    %c0_i32_0 = arith.constant 0 : i32
    %2 = arith.cmpi ne, %1, %c0_i32_0 : i32
    scf.if %2 {
      %c0_8 = arith.constant 0 : index
      %c0_9 = arith.constant 0 : index
      %10 = vector.load %arg2[%c0_8, %c0_9] : memref<8x32xbf16, #tpu.memory_space<vmem>>, vector<8x32xbf16>
      %c0_10 = arith.constant 0 : index
      %c0_11 = arith.constant 0 : index
      %11 = vector.load %arg3[%c0_10, %c0_11] : memref<32x32xbf16, #tpu.memory_space<vmem>>, vector<32x32xbf16>
      %cst_12 = arith.constant dense<0.000000e+00> : vector<8x32xf32>
      %12 = tpu.matmul %10, %11, %cst_12 {dimension_numbers = #tpu.dot_dimension_numbers<[1], [0], [0], [1], [0, 0, 1, 1], [], []>} : vector<8x32xbf16>, vector<32x32xbf16>, vector<8x32xf32> -> vector<8x32xf32>
      %c0_13 = arith.constant 0 : index
      %c0_14 = arith.constant 0 : index
      %13 = vector.load %arg4[%c0_13, %c0_14] : memref<1x32xf32, #tpu.memory_space<vmem>>, vector<1x32xf32>
      %14 = vector.broadcast %13 : vector<1x32xf32> to vector<8x32xf32>
      %15 = arith.addf %12, %14 : vector<8x32xf32>
      %cst_15 = arith.constant 0.000000e+00 : f32
      %16 = vector.broadcast %cst_15 : f32 to vector<8x32xf32>
      %17 = arith.maximumf %15, %16 : vector<8x32xf32>
      %cst_16 = arith.constant dense<0.000000e+00> : vector<8xf32>
      %18 = vector.multi_reduction <add>, %17, %cst_16 [1] : vector<8x32xf32> to vector<8xf32>
      %19 = vector.shape_cast %18 : vector<8xf32> to vector<8x1xf32>
      %cst_17 = arith.constant 3.200000e+01 : f32
      %20 = vector.broadcast %cst_17 : f32 to vector<8x1xf32>
      %21 = arith.divf %19, %20 : vector<8x1xf32>
      %22 = vector.broadcast %21 : vector<8x1xf32> to vector<8x32xf32>
      %23 = arith.subf %17, %22 : vector<8x32xf32>
      %24 = arith.mulf %23, %23 : vector<8x32xf32>
      %cst_18 = arith.constant dense<0.000000e+00> : vector<8xf32>
      %25 = vector.multi_reduction <add>, %24, %cst_18 [1] : vector<8x32xf32> to vector<8xf32>
      %26 = vector.shape_cast %25 : vector<8xf32> to vector<8x1xf32>
      %cst_19 = arith.constant 3.200000e+01 : f32
      %27 = vector.broadcast %cst_19 : f32 to vector<8x1xf32>
      %28 = arith.divf %26, %27 : vector<8x1xf32>
      %29 = vector.broadcast %21 : vector<8x1xf32> to vector<8x32xf32>
      %30 = arith.subf %17, %29 : vector<8x32xf32>
      %cst_20 = arith.constant 9.99999974E-6 : f32
      %31 = vector.broadcast %cst_20 : f32 to vector<8x1xf32>
      %32 = arith.addf %28, %31 : vector<8x1xf32>
      %33 = math.rsqrt %32 : vector<8x1xf32>
      %34 = vector.broadcast %33 : vector<8x1xf32> to vector<8x32xf32>
      %35 = arith.mulf %30, %34 : vector<8x32xf32>
      %c0_21 = arith.constant 0 : index
      %c0_22 = arith.constant 0 : index
      %36 = vector.load %arg5[%c0_21, %c0_22] : memref<1x32xf32, #tpu.memory_space<vmem>>, vector<1x32xf32>
      %37 = vector.broadcast %36 : vector<1x32xf32> to vector<8x32xf32>
      %38 = arith.mulf %35, %37 : vector<8x32xf32>
      %c0_23 = arith.constant 0 : index
      %c0_24 = arith.constant 0 : index
      %39 = vector.load %arg6[%c0_23, %c0_24] : memref<1x32xf32, #tpu.memory_space<vmem>>, vector<1x32xf32>
      %40 = vector.broadcast %39 : vector<1x32xf32> to vector<8x32xf32>
      %41 = arith.addf %38, %40 : vector<8x32xf32>
      %42 = arith.truncf %41 : vector<8x32xf32> to vector<8x32xbf16>
      %c0_25 = arith.constant 0 : index
      %c0_26 = arith.constant 0 : index
      %43 = vector.load %arg10[%c0_25, %c0_26] : memref<8x32xbf16, #tpu.memory_space<vmem>>, vector<8x32xbf16>
      tpu.vector_store %arg10[%c0_25, %c0_26], %42 {strides = array<i32>} : memref<8x32xbf16, #tpu.memory_space<vmem>>, vector<8x32xbf16>,
    } else {
    }
    %c0 = arith.constant 0 : index
    %c0_1 = arith.constant 0 : index
    %3 = vector.load %arg10[%c0, %c0_1] : memref<8x32xbf16, #tpu.memory_space<vmem>>, vector<8x32xbf16>
    %c0_2 = arith.constant 0 : index
    %c0_3 = arith.constant 0 : index
    %4 = vector.load %arg7[%c0_2, %c0_3] : memref<32x128xbf16, #tpu.memory_space<vmem>>, vector<32x128xbf16>
    %cst = arith.constant dense<0.000000e+00> : vector<8x128xf32>
    %5 = tpu.matmul %3, %4, %cst {dimension_numbers = #tpu.dot_dimension_numbers<[1], [0], [0], [1], [0, 0, 1, 1], [], []>} : vector<8x32xbf16>, vector<32x128xbf16>, vector<8x128xf32> -> vector<8x128xf32>
    %c0_4 = arith.constant 0 : index
    %c0_5 = arith.constant 0 : index
    %6 = vector.load %arg8[%c0_4, %c0_5] : memref<1x128xf32, #tpu.memory_space<vmem>>, vector<1x128xf32>
    %7 = vector.broadcast %6 : vector<1x128xf32> to vector<8x128xf32>
    %8 = arith.addf %5, %7 : vector<8x128xf32>
    %c0_6 = arith.constant 0 : index
    %c0_7 = arith.constant 0 : index
    %9 = vector.load %arg9[%c0_6, %c0_7] : memref<8x128xf32, #tpu.memory_space<vmem>>, vector<8x128xf32>
    tpu.vector_store %arg9[%c0_6, %c0_7], %8 {strides = array<i32>} : memref<8x128xf32, #tpu.memory_space<vmem>>, vector<8x128xf32>,
    return
  }
  func.func @transform_0(%arg0: i32, %arg1: i32) -> (i32, i32) {
    %c0_i32 = arith.constant 0 : i32
    %c0_i32_0 = arith.constant 0 : i32
    return %arg0, %c0_i32 : i32, i32
  }
  func.func @transform_1(%arg0: i32, %arg1: i32) -> (i32, i32) {
    %c0_i32 = arith.constant 0 : i32
    %c0_i32_0 = arith.constant 0 : i32
    %c0_i32_1 = arith.constant 0 : i32
    return %c0_i32, %c0_i32_0 : i32, i32
  }
  func.func @transform_2(%arg0: i32, %arg1: i32) -> (i32, i32) {
    %c0_i32 = arith.constant 0 : i32
    %c0_i32_0 = arith.constant 0 : i32
    %c0_i32_1 = arith.constant 0 : i32
    return %c0_i32, %c0_i32_0 : i32, i32
  }
  func.func @transform_3(%arg0: i32, %arg1: i32) -> (i32, i32) {
    %c0_i32 = arith.constant 0 : i32
    %c0_i32_0 = arith.constant 0 : i32
    %c0_i32_1 = arith.constant 0 : i32
    return %c0_i32, %c0_i32_0 : i32, i32
  }
  func.func @transform_4(%arg0: i32, %arg1: i32) -> (i32, i32) {
    %c0_i32 = arith.constant 0 : i32
    %c0_i32_0 = arith.constant 0 : i32
    %c0_i32_1 = arith.constant 0 : i32
    return %c0_i32, %c0_i32_0 : i32, i32
  }
  func.func @transform_5(%arg0: i32, %arg1: i32) -> (i32, i32) {
    %c0_i32 = arith.constant 0 : i32
    %c0_i32_0 = arith.constant 0 : i32
    return %c0_i32, %arg1 : i32, i32
  }
  func.func @transform_6(%arg0: i32, %arg1: i32) -> (i32, i32) {
    %c0_i32 = arith.constant 0 : i32
    %c0_i32_0 = arith.constant 0 : i32
    return %c0_i32, %arg1 : i32, i32
  }
  func.func @transform_7(%arg0: i32, %arg1: i32) -> (i32, i32) {
    %c0_i32 = arith.constant 0 : i32
    return %arg0, %arg1 : i32, i32
  }
}

module attributes {stable_mosaic.version = 11 : i64} {
  func.func @_masklm_kernel(%arg0: i32, %arg1: i32, %arg2: memref<8x32xbf16, #tpu.memory_space<vmem>>, %arg3: memref<32x32xbf16, #tpu.memory_space<vmem>>, %arg4: memref<1x32xf32, #tpu.memory_space<vmem>>, %arg5: memref<1x32xf32, #tpu.memory_space<vmem>>, %arg6: memref<1x32xf32, #tpu.memory_space<vmem>>, %arg7: memref<32x128xbf16, #tpu.memory_space<vmem>>, %arg8: memref<1x128xf32, #tpu.memory_space<vmem>>, %arg9: memref<8x128xf32, #tpu.memory_space<vmem>>, %arg10: memref<8x32xbf16, #tpu.memory_space<vmem>>) attributes {dimension_semantics = [#tpu.dimension_semantics<parallel>, #tpu.dimension_semantics<arbitrary>], iteration_bounds = array<i64: 1, 1>, scalar_prefetch = 0 : i64, scratch_operands = 1 : i64, tpu.core_type = #tpu.core_type<tc>, window_params = [{transform_indices = @transform_0, window_bounds = array<i64: 8, 32>}, {pipeline_mode = #tpu.pipeline_mode<synchronous>, transform_indices = @transform_1, window_bounds = array<i64: 32, 32>}, {pipeline_mode = #tpu.pipeline_mode<synchronous>, transform_indices = @transform_2, window_bounds = array<i64: 1, 32>}, {pipeline_mode = #tpu.pipeline_mode<synchronous>, transform_indices = @transform_3, window_bounds = array<i64: 1, 32>}, {pipeline_mode = #tpu.pipeline_mode<synchronous>, transform_indices = @transform_4, window_bounds = array<i64: 1, 32>}, {transform_indices = @transform_5, window_bounds = array<i64: 32, 128>}, {transform_indices = @transform_6, window_bounds = array<i64: 1, 128>}, {transform_indices = @transform_7, window_bounds = array<i64: 8, 128>}]} {
    %c0_i32 = arith.constant 0 : i32
    %0 = arith.cmpi eq, %arg1, %c0_i32 : i32
    %1 = arith.extui %0 : i1 to i32
    %c0_i32_0 = arith.constant 0 : i32
    %2 = arith.cmpi ne, %1, %c0_i32_0 : i32
    scf.if %2 {
      %c0_8 = arith.constant 0 : index
      %c0_9 = arith.constant 0 : index
      %10 = vector.load %arg2[%c0_8, %c0_9] : memref<8x32xbf16, #tpu.memory_space<vmem>>, vector<8x32xbf16>
      %c0_10 = arith.constant 0 : index
      %c0_11 = arith.constant 0 : index
      %11 = vector.load %arg3[%c0_10, %c0_11] : memref<32x32xbf16, #tpu.memory_space<vmem>>, vector<32x32xbf16>
      %cst_12 = arith.constant dense<0.000000e+00> : vector<8x32xf32>
      %12 = tpu.matmul %10, %11, %cst_12 {dimension_numbers = #tpu.dot_dimension_numbers<[1], [0], [0], [1], [0, 0, 1, 1], [], []>} : vector<8x32xbf16>, vector<32x32xbf16>, vector<8x32xf32> -> vector<8x32xf32>
      %c0_13 = arith.constant 0 : index
      %c0_14 = arith.constant 0 : index
      %13 = vector.load %arg4[%c0_13, %c0_14] : memref<1x32xf32, #tpu.memory_space<vmem>>, vector<1x32xf32>
      %14 = vector.broadcast %13 : vector<1x32xf32> to vector<8x32xf32>
      %15 = arith.addf %12, %14 : vector<8x32xf32>
      %cst_15 = arith.constant 0.000000e+00 : f32
      %16 = vector.broadcast %cst_15 : f32 to vector<8x32xf32>
      %17 = arith.maximumf %15, %16 : vector<8x32xf32>
      %cst_16 = arith.constant dense<0.000000e+00> : vector<8xf32>
      %18 = vector.multi_reduction <add>, %17, %cst_16 [1] : vector<8x32xf32> to vector<8xf32>
      %19 = vector.shape_cast %18 : vector<8xf32> to vector<8x1xf32>
      %cst_17 = arith.constant 3.200000e+01 : f32
      %20 = vector.broadcast %cst_17 : f32 to vector<8x1xf32>
      %21 = arith.divf %19, %20 : vector<8x1xf32>
      %22 = vector.broadcast %21 : vector<8x1xf32> to vector<8x32xf32>
      %23 = arith.subf %17, %22 : vector<8x32xf32>
      %24 = arith.mulf %23, %23 : vector<8x32xf32>
      %cst_18 = arith.constant dense<0.000000e+00> : vector<8xf32>
      %25 = vector.multi_reduction <add>, %24, %cst_18 [1] : vector<8x32xf32> to vector<8xf32>
      %26 = vector.shape_cast %25 : vector<8xf32> to vector<8x1xf32>
      %cst_19 = arith.constant 3.200000e+01 : f32
      %27 = vector.broadcast %cst_19 : f32 to vector<8x1xf32>
      %28 = arith.divf %26, %27 : vector<8x1xf32>
      %29 = vector.broadcast %21 : vector<8x1xf32> to vector<8x32xf32>
      %30 = arith.subf %17, %29 : vector<8x32xf32>
      %cst_20 = arith.constant 9.99999974E-6 : f32
      %31 = vector.broadcast %cst_20 : f32 to vector<8x1xf32>
      %32 = arith.addf %28, %31 : vector<8x1xf32>
      %33 = math.rsqrt %32 : vector<8x1xf32>
      %34 = vector.broadcast %33 : vector<8x1xf32> to vector<8x32xf32>
      %35 = arith.mulf %30, %34 : vector<8x32xf32>
      %c0_21 = arith.constant 0 : index
      %c0_22 = arith.constant 0 : index
      %36 = vector.load %arg5[%c0_21, %c0_22] : memref<1x32xf32, #tpu.memory_space<vmem>>, vector<1x32xf32>
      %37 = vector.broadcast %36 : vector<1x32xf32> to vector<8x32xf32>
      %38 = arith.mulf %35, %37 : vector<8x32xf32>
      %c0_23 = arith.constant 0 : index
      %c0_24 = arith.constant 0 : index
      %39 = vector.load %arg6[%c0_23, %c0_24] : memref<1x32xf32, #tpu.memory_space<vmem>>, vector<1x32xf32>
      %40 = vector.broadcast %39 : vector<1x32xf32> to vector<8x32xf32>
      %41 = arith.addf %38, %40 : vector<8x32xf32>
      %42 = arith.truncf %41 : vector<8x32xf32> to vector<8x32xbf16>
      %c0_25 = arith.constant 0 : index
      %c0_26 = arith.constant 0 : index
      %43 = vector.load %arg10[%c0_25, %c0_26] : memref<8x32xbf16, #tpu.memory_space<vmem>>, vector<8x32xbf16>
      tpu.vector_store %arg10[%c0_25, %c0_26], %42 {strides = array<i32>} : memref<8x32xbf16, #tpu.memory_space<vmem>>, vector<8x32xbf16>,
    } else {
    }
    %c0 = arith.constant 0 : index
    %c0_1 = arith.constant 0 : index
    %3 = vector.load %arg10[%c0, %c0_1] : memref<8x32xbf16, #tpu.memory_space<vmem>>, vector<8x32xbf16>
    %c0_2 = arith.constant 0 : index
    %c0_3 = arith.constant 0 : index
    %4 = vector.load %arg7[%c0_2, %c0_3] : memref<32x128xbf16, #tpu.memory_space<vmem>>, vector<32x128xbf16>
    %cst = arith.constant dense<0.000000e+00> : vector<8x128xf32>
    %5 = tpu.matmul %3, %4, %cst {dimension_numbers = #tpu.dot_dimension_numbers<[1], [0], [0], [1], [0, 0, 1, 1], [], []>} : vector<8x32xbf16>, vector<32x128xbf16>, vector<8x128xf32> -> vector<8x128xf32>
    %c0_4 = arith.constant 0 : index
    %c0_5 = arith.constant 0 : index
    %6 = vector.load %arg8[%c0_4, %c0_5] : memref<1x128xf32, #tpu.memory_space<vmem>>, vector<1x128xf32>
    %7 = vector.broadcast %6 : vector<1x128xf32> to vector<8x128xf32>
    %8 = arith.addf %5, %7 : vector<8x128xf32>
    %c0_6 = arith.constant 0 : index
    %c0_7 = arith.constant 0 : index
    %9 = vector.load %arg9[%c0_6, %c0_7] : memref<8x128xf32, #tpu.memory_space<vmem>>, vector<8x128xf32>
    tpu.vector_store %arg9[%c0_6, %c0_7], %8 {strides = array<i32>} : memref<8x128xf32, #tpu.memory_space<vmem>>, vector<8x128xf32>,
    return
  }
  func.func @transform_0(%arg0: i32, %arg1: i32) -> (i32, i32) {
    %c0_i32 = arith.constant 0 : i32
    %c0_i32_0 = arith.constant 0 : i32
    return %arg0, %c0_i32 : i32, i32
  }
  func.func @transform_1(%arg0: i32, %arg1: i32) -> (i32, i32) {
    %c0_i32 = arith.constant 0 : i32
    %c0_i32_0 = arith.constant 0 : i32
    %c0_i32_1 = arith.constant 0 : i32
    return %c0_i32, %c0_i32_0 : i32, i32
  }
  func.func @transform_2(%arg0: i32, %arg1: i32) -> (i32, i32) {
    %c0_i32 = arith.constant 0 : i32
    %c0_i32_0 = arith.constant 0 : i32
    %c0_i32_1 = arith.constant 0 : i32
    return %c0_i32, %c0_i32_0 : i32, i32
  }
  func.func @transform_3(%arg0: i32, %arg1: i32) -> (i32, i32) {
    %c0_i32 = arith.constant 0 : i32
    %c0_i32_0 = arith.constant 0 : i32
    %c0_i32_1 = arith.constant 0 : i32
    return %c0_i32, %c0_i32_0 : i32, i32
  }
  func.func @transform_4(%arg0: i32, %arg1: i32) -> (i32, i32) {
    %c0_i32 = arith.constant 0 : i32
    %c0_i32_0 = arith.constant 0 : i32
    %c0_i32_1 = arith.constant 0 : i32
    return %c0_i32, %c0_i32_0 : i32, i32
  }
  func.func @transform_5(%arg0: i32, %arg1: i32) -> (i32, i32) {
    %c0_i32 = arith.constant 0 : i32
    %c0_i32_0 = arith.constant 0 : i32
    return %c0_i32, %arg1 : i32, i32
  }
  func.func @transform_6(%arg0: i32, %arg1: i32) -> (i32, i32) {
    %c0_i32 = arith.constant 0 : i32
    %c0_i32_0 = arith.constant 0 : i32
    return %c0_i32, %arg1 : i32, i32
  }
  func.func @transform_7(%arg0: i32, %arg1: i32) -> (i32, i32) {
    %c0_i32 = arith.constant 0 : i32
    return %arg0, %arg1 : i32, i32
  }
}

</mosaic_0001>

<llo_original>
// kernel: tpu_custom_call.1
$region0: #{tpu_custom_call.1}
  #allocation0 [shape = 'u32[]', space=smem, size = 0x4, offset = 0x4, fixed_abs, tag = 'smem constant byte address 0x4 - core index']
  #allocation1 [shape = 'u32[144,128]{1,0:T(1,128)}', space=vmem, size = 0x12000, scoped, tag = 'internal scratch']
  #allocation2 [shape = 'bf16[8,32]{1,0:T(8,128)(2,1)}', space=vmem, size = 0x800, scoped, tag = 'scratch operand']
  %s0 = inlined_call_operand.hbm [shape: bf16[8,32], index: 0, kind: input, shape index: {}]
  %s1 = inlined_call_operand.hbm [shape: bf16[32,32], index: 1, kind: input, shape index: {}]
  %s2 = inlined_call_operand.vmem [shape: f32[1,32], index: 2, kind: input, shape index: {}]
  %s3 = inlined_call_operand.vmem [shape: f32[1,32], index: 3, kind: input, shape index: {}]
  %s4 = inlined_call_operand.hbm [shape: f32[1,32], index: 4, kind: input, shape index: {}]
  %s5 = inlined_call_operand.vmem [shape: bf16[32,128], index: 5, kind: input, shape index: {}]
  %s6 = inlined_call_operand.vmem [shape: f32[1,128], index: 6, kind: input, shape index: {}]
  %s7 = inlined_call_operand.hbm [shape: f32[8,128], index: 7, kind: output, shape index: {}]
  %s8 = sld [smem:[#allocation0]]
  $region54: #{tpu_custom_call.1} parent=0
    _
  %s10 = ssub.s32 1, %s8
  %s11 = scalar_select 0, %s10, %s8
  $region1: #{tpu_custom_call.1} parent=0
    #allocation3 [shape = 'u8[2048]{0}', space=vmem, size = 0x800, scoped, tag = 'input window, operand 0, single buffered']
    #allocation4 [shape = 's32[1]{0}', space=sflag, size = 0x4, scoped, tag = 'scoped memory for tpu_custom_call.1']
    #allocation5 [shape = 's32[1]{0}', space=sflag, size = 0x4, scoped, tag = 'scoped memory for tpu_custom_call.1']
    #allocation6 [shape = 'u8[8192]{0}', space=vmem, size = 0x2000, scoped, tag = 'input window, operand 1, single buffered']
    #allocation7 [shape = 's32[1]{0}', space=sflag, size = 0x4, scoped, tag = 'scoped memory for tpu_custom_call.1']
    #allocation8 [shape = 'u8[512]{0}', space=vmem, size = 0x400, scoped, tag = 'input window, operand 4, single buffered']
    #allocation9 [shape = 'u8[4096]{0}', space=vmem, size = 0x1000, scoped, tag = 'output window, operand 0, single buffered']
    %12 = vsyncpa [#allocation4], 0
    %13 = vsyncpa [#allocation7], 0
    %14 = vsyncpa [#allocation5], 0
    // Predicated region
    $region2: #{tpu_custom_call.1} parent=1 // pred_check
      _
    $region3: #{tpu_custom_call.1} parent=1 // pred_check_branch
      %16 = sbr.rel (0) target = $region5
    $region4: #{tpu_custom_call.1} parent=1 // pred_region
      %s18 = ssub.s32 64, 64
      %19 = vsyncadd [#allocation4], %s18
      %s21 = sshll.u32 [#allocation3], 4
      %s22 = int_to_ptr.vmem [resolvable:$true] %s21
      %24 = dma.hbm_to_vmem [thread:$0]  %s0, 64, %s22, [#allocation4]
    $region5: #{tpu_custom_call.1} parent=1 // pred_fallthru
      _
    // Predicated region
    $region6: #{tpu_custom_call.1} parent=1 // pred_check
      _
    $region7: #{tpu_custom_call.1} parent=1 // pred_check_branch
      %26 = sbr.rel (0) target = $region9
    $region8: #{tpu_custom_call.1} parent=1 // pred_region
      %s28 = ssub.s32 256, 256
      %29 = vsyncadd [#allocation7], %s28
      %s30 = sshll.u32 [#allocation6], 4
      %s31 = int_to_ptr.vmem [resolvable:$true] %s30
      %36 = dma.hbm_to_vmem [thread:$0]  %s1, 256, %s31, [#allocation7], 64, 64, 4
    $region9: #{tpu_custom_call.1} parent=1 // pred_fallthru
      _
    // Predicated region
    $region10: #{tpu_custom_call.1} parent=1 // pred_check
      _
    $region11: #{tpu_custom_call.1} parent=1 // pred_check_branch
      %38 = sbr.rel (0) target = $region13
    $region12: #{tpu_custom_call.1} parent=1 // pred_region
      _
    $region13: #{tpu_custom_call.1} parent=1 // pred_fallthru
      _
    // Predicated region
    $region14: #{tpu_custom_call.1} parent=1 // pred_check
      _
    $region15: #{tpu_custom_call.1} parent=1 // pred_check_branch
      %40 = sbr.rel (0) target = $region17
    $region16: #{tpu_custom_call.1} parent=1 // pred_region
      _
    $region17: #{tpu_custom_call.1} parent=1 // pred_fallthru
      _
    // Predicated region
    $region18: #{tpu_custom_call.1} parent=1 // pred_check
      _
    $region19: #{tpu_custom_call.1} parent=1 // pred_check_branch
      %42 = sbr.rel (0) target = $region21
    $region20: #{tpu_custom_call.1} parent=1 // pred_region
      %s44 = ssub.s32 16, 16
      %45 = vsyncadd [#allocation7], %s44
      %s47 = sshll.u32 [#allocation8], 4
      %s48 = int_to_ptr.vmem [resolvable:$true] %s47
      %50 = dma.hbm_to_vmem [thread:$0]  %s4, 16, %s48, [#allocation7]
    $region21: #{tpu_custom_call.1} parent=1 // pred_fallthru
      _
    // Predicated region
    $region22: #{tpu_custom_call.1} parent=1 // pred_check
      _
    $region23: #{tpu_custom_call.1} parent=1 // pred_check_branch
      %52 = sbr.rel (0) target = $region25
    $region24: #{tpu_custom_call.1} parent=1 // pred_region
      _
    $region25: #{tpu_custom_call.1} parent=1 // pred_fallthru
      _
    // Predicated region
    $region26: #{tpu_custom_call.1} parent=1 // pred_check
      _
    $region27: #{tpu_custom_call.1} parent=1 // pred_check_branch
      %54 = sbr.rel (0) target = $region29
    $region28: #{tpu_custom_call.1} parent=1 // pred_region
      _
    $region29: #{tpu_custom_call.1} parent=1 // pred_fallthru
      _
    // Predicated region
    $region30: #{tpu_custom_call.1} parent=1 // pred_check
      _
    $region31: #{tpu_custom_call.1} parent=1 // pred_check_branch
      %56 = sbr.rel (0) target = $region33
    $region32: #{tpu_custom_call.1} parent=1 // pred_region
      %57 = dma.done [#allocation4], 64
    $region33: #{tpu_custom_call.1} parent=1 // pred_fallthru
      _
    // Predicated region
    $region34: #{tpu_custom_call.1} parent=1 // pred_check
      _
    $region35: #{tpu_custom_call.1} parent=1 // pred_check_branch
      %59 = sbr.rel (0) target = $region37
    $region36: #{tpu_custom_call.1} parent=1 // pred_region
      %60 = dma.done [#allocation7], 256
    $region37: #{tpu_custom_call.1} parent=1 // pred_fallthru
      _
    // Predicated region
    $region38: #{tpu_custom_call.1} parent=1 // pred_check
      _
    $region39: #{tpu_custom_call.1} parent=1 // pred_check_branch
      %62 = sbr.rel (0) target = $region41
    $region40: #{tpu_custom_call.1} parent=1 // pred_region
      %63 = dma.done [#allocation7], 16
    $region41: #{tpu_custom_call.1} parent=1 // pred_fallthru
      _
    %p65 = scmp.eq.s32.totalorder 0, 0
    // Predicated region
    $region42: #{tpu_custom_call.1} parent=1 // pred_check
      %p66 = pneg %p65
    $region43: #{tpu_custom_call.1} parent=1 // pred_check_branch
      %68 = sbr.rel (%p66) target = $region45
    $region44: #{tpu_custom_call.1} parent=1 // pred_region
      %v69 = vld [vmem:[#allocation3] sm:$0xf]
      %v70 = vld [vmem:[#allocation6] sm:$0xf]
      %v71 = vld [vmem:[#allocation6 + $0x4] sm:$0xf]
      %v72 = vld [vmem:[#allocation6 + $0x8] sm:$0xf]
      %v73 = vld [vmem:[#allocation6 + $0xc] sm:$0xf]
      %v74 = vld [vmem:[%s2] sm:$0x1]
      %v76 = vlaneseq
      %v77 = vshrl.u32 %v76, 7
      %v78 = vsub.s32 0, %v77
      %v79 = vrot.slane %v74, %v78
      %v85 = vunpack.c.l.b16 %v70
      %v86 = vunpack.c.l.b16 %v71
      %v87 = vunpack.c.l.b16 %v72
      %v88 = vunpack.c.l.b16 %v73
      %v89 = vpack.c.b16 %v86, %v85
      %v90 = vpack.c.b16 %v88, %v87
      %vm93 = vcmask 261120
      %v95 = vsel %vm93, %v69, 0
      %97 = vmatprep.subr.bf16.mxu0 0
      %98 = vmatpush1.bf16.msra.mxu0 %v89
      %99 = vmatprep.subr.bf16.mxu0 0
      %100 = vmatpush1.bf16.msra.mxu0 %v90
      %101 = vmatprep.subr.bf16.mxu0 0
      %102 = vmatpush1.bf16.msra.mxu0 0
      %103 = vmatprep.subr.bf16.mxu0 0
      %104 = vmatpush1.bf16.msra.mxu0 0
      %105 = vmatprep.subr.bf16.mxu0 0
      %106 = vmatpush1.bf16.msra.mxu0 0
      %107 = vmatprep.subr.bf16.mxu0 0
      %108 = vmatpush1.bf16.msra.mxu0 0
      %109 = vmatprep.subr.bf16.mxu0 0
      %110 = vmatpush1.bf16.msra.mxu0 0
      %111 = vmatprep.subr.bf16.mxu0 0
      %112 = vmatpush1.bf16.msra.mxu0 0
      %113 = vmatprep.subr.bf16.mxu0 0
      %114 = vmatpush1.bf16.msra.mxu0 0
      %115 = vmatprep.subr.bf16.mxu0 0
      %116 = vmatpush1.bf16.msra.mxu0 0
      %117 = vmatprep.subr.bf16.mxu0 0
      %118 = vmatpush1.bf16.msra.mxu0 0
      %119 = vmatprep.subr.bf16.mxu0 0
      %120 = vmatpush1.bf16.msra.mxu0 0
      %121 = vmatprep.subr.bf16.mxu0 0
      %122 = vmatpush1.bf16.msra.mxu0 0
      %123 = vmatprep.subr.bf16.mxu0 0
      %124 = vmatpush1.bf16.msra.mxu0 0
      %125 = vmatprep.subr.bf16.mxu0 0
      %126 = vmatpush1.bf16.msra.mxu0 0
      %127 = vmatprep.subr.bf16.mxu0 0
      %128 = vmatpush1.bf16.msra.mxu0 0
      %129 = vmatprep.mubr.bf16.mxu0 0
      %130 = vmatmul.mubr.bf16.gmra.mrb[0].mxu0 %v95
      %v131 = vpop.f32.mrb[0].mxu0
      %v132 = vadd.f32 %v79, %v131
      %v133 = vpop.f32.mrb[0].mxu0
      %v134 = vpop.f32.mrb[0].mxu0
      %v135 = vpop.f32.mrb[0].mxu0
      %136 = vdwg.mxu0
      %v137 = vmax.f32 %v132, 0.0
      %v138 = vsel %vm93, %v137, 0.0
      %139 = vadd.xlane.f32.xlu0 %v138
      %v140 = vpop.xlane.xlu0 %139
      %v141 = vrcp.pop 32.0
      %v142 = vmul.f32 %v140, %v141
      %v143 = vsub.f32 %v137, %v142
      %v144 = vmul.f32 %v143, %v143
      %v145 = vsel %vm93, %v144, 0.0
      %146 = vadd.xlane.f32.xlu0 %v145
      %v147 = vpop.xlane.xlu0 %146
      %v148 = vmul.f32 %v147, %v141
      %v149 = vadd.f32 %v148, 1e-05
      %v150 = vrsqrt.pop %v149
      %v151 = vmul.f32 %v143, %v150
      %v152 = vld [vmem:[%s3] sm:$0x1]
      %v154 = vlaneseq
      %v155 = vshrl.u32 %v154, 7
      %v156 = vsub.s32 0, %v155
      %v157 = vrot.slane %v152, %v156
      %v159 = vmul.f32 %v151, %v157
      %v160 = vld [vmem:[#allocation8] sm:$0x1]
      %v162 = vlaneseq
      %v163 = vshrl.u32 %v162, 7
      %v164 = vsub.s32 0, %v163
      %v165 = vrot.slane %v160, %v164
      %v167 = vadd.f32 %v159, %v165
      %v168 = vpack.c.bf16 %v167, %v167
      %vm169 = vcmask 257024
      %170 = vst.msk [vmem:[#allocation2] sm:$0xf] %vm169, %v168
    $region45: #{tpu_custom_call.1} parent=1 // pred_fallthru
      _
    %v171 = vld [vmem:[#allocation2] sm:$0xf]
    %v172 = vld [vmem:[%s5] sm:$0xf]
    %v173 = vld [vmem:[%s5 + $0x4] sm:$0xf]
    %v174 = vld [vmem:[%s5 + $0x8] sm:$0xf]
    %v175 = vld [vmem:[%s5 + $0xc] sm:$0xf]
    %v176 = vld [vmem:[%s6] sm:$0x1]
    %v178 = vlaneseq
    %v179 = vshrl.u32 %v178, 7
    %v180 = vsub.s32 0, %v179
    %v181 = vrot.slane %v176, %v180
    %v187 = vunpack.c.l.b16 %v172
    %v188 = vunpack.c.l.b16 %v173
    %v189 = vunpack.c.l.b16 %v174
    %v190 = vunpack.c.l.b16 %v175
    %v191 = vpack.c.b16 %v188, %v187
    %v192 = vpack.c.b16 %v190, %v189
    %vm195 = vcmask 261120
    %v197 = vsel %vm195, %v171, 0
    %199 = vmatprep.subr.bf16.mxu0 0
    %200 = vmatpush1.bf16.msra.mxu0 %v191
    %201 = vmatprep.subr.bf16.mxu0 0
    %202 = vmatpush1.bf16.msra.mxu0 %v192
    %203 = vmatprep.subr.bf16.mxu0 0
    %204 = vmatpush1.bf16.msra.mxu0 0
    %205 = vmatprep.subr.bf16.mxu0 0
    %206 = vmatpush1.bf16.msra.mxu0 0
    %207 = vmatprep.subr.bf16.mxu0 0
    %208 = vmatpush1.bf16.msra.mxu0 0
    %209 = vmatprep.subr.bf16.mxu0 0
    %210 = vmatpush1.bf16.msra.mxu0 0
    %211 = vmatprep.subr.bf16.mxu0 0
    %212 = vmatpush1.bf16.msra.mxu0 0
    %213 = vmatprep.subr.bf16.mxu0 0
    %214 = vmatpush1.bf16.msra.mxu0 0
    %215 = vmatprep.subr.bf16.mxu0 0
    %216 = vmatpush1.bf16.msra.mxu0 0
    %217 = vmatprep.subr.bf16.mxu0 0
    %218 = vmatpush1.bf16.msra.mxu0 0
    %219 = vmatprep.subr.bf16.mxu0 0
    %220 = vmatpush1.bf16.msra.mxu0 0
    %221 = vmatprep.subr.bf16.mxu0 0
    %222 = vmatpush1.bf16.msra.mxu0 0
    %223 = vmatprep.subr.bf16.mxu0 0
    %224 = vmatpush1.bf16.msra.mxu0 0
    %225 = vmatprep.subr.bf16.mxu0 0
    %226 = vmatpush1.bf16.msra.mxu0 0
    %227 = vmatprep.subr.bf16.mxu0 0
    %228 = vmatpush1.bf16.msra.mxu0 0
    %229 = vmatprep.subr.bf16.mxu0 0
    %230 = vmatpush1.bf16.msra.mxu0 0
    %231 = vmatprep.mubr.bf16.mxu0 0
    %232 = vmatmul.mubr.bf16.gmra.mrb[0].mxu0 %v197
    %v233 = vpop.f32.mrb[0].mxu0
    %v234 = vadd.f32 %v181, %v233
    %v235 = vpop.f32.mrb[0].mxu0
    %v236 = vpop.f32.mrb[0].mxu0
    %v237 = vpop.f32.mrb[0].mxu0
    %238 = vdwg.mxu0
    %239 = vst [vmem:[#allocation9] sm:$0xff] %v234
    // Predicated region
    $region46: #{tpu_custom_call.1} parent=1 // pred_check
      _
    $region47: #{tpu_custom_call.1} parent=1 // pred_check_branch
      %241 = sbr.rel (0) target = $region49
    $region48: #{tpu_custom_call.1} parent=1 // pred_region
      %s243 = ssub.s32 128, 128
      %244 = vsyncadd [#allocation5], %s243
      %s246 = sshll.u32 [#allocation9], 4
      %s247 = int_to_ptr.vmem [resolvable:$true] %s246
      %249 = dma.vmem_to_hbm [thread:$0]  %s247, 128, %s7, [#allocation5]
    $region49: #{tpu_custom_call.1} parent=1 // pred_fallthru
      _
    // Predicated region
    $region50: #{tpu_custom_call.1} parent=1 // pred_check
      _
    $region51: #{tpu_custom_call.1} parent=1 // pred_check_branch
      %251 = sbr.rel (0) target = $region53
    $region52: #{tpu_custom_call.1} parent=1 // pred_region
      %252 = dma.done [#allocation5], 128
    $region53: #{tpu_custom_call.1} parent=1 // pred_fallthru
      _
    %253 = vsyncpa [#allocation4], 1
    %254 = vsyncpa [#allocation7], 1
    %255 = vsyncpa [#allocation5], 1

// kernel: tpu_custom_call.1
$region0: #{tpu_custom_call.1}
  #allocation0 [shape = 'u32[]', space=smem, size = 0x4, offset = 0x4, fixed_abs, tag = 'smem constant byte address 0x4 - core index']
  #allocation1 [shape = 'u32[144,128]{1,0:T(1,128)}', space=vmem, size = 0x12000, scoped, tag = 'internal scratch']
  #allocation2 [shape = 'bf16[8,32]{1,0:T(8,128)(2,1)}', space=vmem, size = 0x800, scoped, tag = 'scratch operand']
  %s0 = inlined_call_operand.hbm [shape: bf16[8,32], index: 0, kind: input, shape index: {}]
  %s1 = inlined_call_operand.hbm [shape: bf16[32,32], index: 1, kind: input, shape index: {}]
  %s2 = inlined_call_operand.vmem [shape: f32[1,32], index: 2, kind: input, shape index: {}]
  %s3 = inlined_call_operand.vmem [shape: f32[1,32], index: 3, kind: input, shape index: {}]
  %s4 = inlined_call_operand.hbm [shape: f32[1,32], index: 4, kind: input, shape index: {}]
  %s5 = inlined_call_operand.vmem [shape: bf16[32,128], index: 5, kind: input, shape index: {}]
  %s6 = inlined_call_operand.vmem [shape: f32[1,128], index: 6, kind: input, shape index: {}]
  %s7 = inlined_call_operand.hbm [shape: f32[8,128], index: 7, kind: output, shape index: {}]
  %s8 = sld [smem:[#allocation0]]
  $region54: #{tpu_custom_call.1} parent=0
    _
  %s10 = ssub.s32 1, %s8
  %s11 = scalar_select 0, %s10, %s8
  $region1: #{tpu_custom_call.1} parent=0
    #allocation3 [shape = 'u8[2048]{0}', space=vmem, size = 0x800, scoped, tag = 'input window, operand 0, single buffered']
    #allocation4 [shape = 's32[1]{0}', space=sflag, size = 0x4, scoped, tag = 'scoped memory for tpu_custom_call.1']
    #allocation5 [shape = 's32[1]{0}', space=sflag, size = 0x4, scoped, tag = 'scoped memory for tpu_custom_call.1']
    #allocation6 [shape = 'u8[8192]{0}', space=vmem, size = 0x2000, scoped, tag = 'input window, operand 1, single buffered']
    #allocation7 [shape = 's32[1]{0}', space=sflag, size = 0x4, scoped, tag = 'scoped memory for tpu_custom_call.1']
    #allocation8 [shape = 'u8[512]{0}', space=vmem, size = 0x400, scoped, tag = 'input window, operand 4, single buffered']
    #allocation9 [shape = 'u8[4096]{0}', space=vmem, size = 0x1000, scoped, tag = 'output window, operand 0, single buffered']
    %12 = vsyncpa [#allocation4], 0
    %13 = vsyncpa [#allocation7], 0
    %14 = vsyncpa [#allocation5], 0
    // Predicated region
    $region2: #{tpu_custom_call.1} parent=1 // pred_check
      _
    $region3: #{tpu_custom_call.1} parent=1 // pred_check_branch
      %16 = sbr.rel (0) target = $region5
    $region4: #{tpu_custom_call.1} parent=1 // pred_region
      %s18 = ssub.s32 64, 64
      %19 = vsyncadd [#allocation4], %s18
      %s21 = sshll.u32 [#allocation3], 4
      %s22 = int_to_ptr.vmem [resolvable:$true] %s21
      %24 = dma.hbm_to_vmem [thread:$0]  %s0, 64, %s22, [#allocation4]
    $region5: #{tpu_custom_call.1} parent=1 // pred_fallthru
      _
    // Predicated region
    $region6: #{tpu_custom_call.1} parent=1 // pred_check
      _
    $region7: #{tpu_custom_call.1} parent=1 // pred_check_branch
      %26 = sbr.rel (0) target = $region9
    $region8: #{tpu_custom_call.1} parent=1 // pred_region
      %s28 = ssub.s32 256, 256
      %29 = vsyncadd [#allocation7], %s28
      %s30 = sshll.u32 [#allocation6], 4
      %s31 = int_to_ptr.vmem [resolvable:$true] %s30
      %36 = dma.hbm_to_vmem [thread:$0]  %s1, 256, %s31, [#allocation7], 64, 64, 4
    $region9: #{tpu_custom_call.1} parent=1 // pred_fallthru
      _
    // Predicated region
    $region10: #{tpu_custom_call.1} parent=1 // pred_check
      _
    $region11: #{tpu_custom_call.1} parent=1 // pred_check_branch
      %38 = sbr.rel (0) target = $region13
    $region12: #{tpu_custom_call.1} parent=1 // pred_region
      _
    $region13: #{tpu_custom_call.1} parent=1 // pred_fallthru
      _
    // Predicated region
    $region14: #{tpu_custom_call.1} parent=1 // pred_check
      _
    $region15: #{tpu_custom_call.1} parent=1 // pred_check_branch
      %40 = sbr.rel (0) target = $region17
    $region16: #{tpu_custom_call.1} parent=1 // pred_region
      _
    $region17: #{tpu_custom_call.1} parent=1 // pred_fallthru
      _
    // Predicated region
    $region18: #{tpu_custom_call.1} parent=1 // pred_check
      _
    $region19: #{tpu_custom_call.1} parent=1 // pred_check_branch
      %42 = sbr.rel (0) target = $region21
    $region20: #{tpu_custom_call.1} parent=1 // pred_region
      %s44 = ssub.s32 16, 16
      %45 = vsyncadd [#allocation7], %s44
      %s47 = sshll.u32 [#allocation8], 4
      %s48 = int_to_ptr.vmem [resolvable:$true] %s47
      %50 = dma.hbm_to_vmem [thread:$0]  %s4, 16, %s48, [#allocation7]
    $region21: #{tpu_custom_call.1} parent=1 // pred_fallthru
      _
    // Predicated region
    $region22: #{tpu_custom_call.1} parent=1 // pred_check
      _
    $region23: #{tpu_custom_call.1} parent=1 // pred_check_branch
      %52 = sbr.rel (0) target = $region25
    $region24: #{tpu_custom_call.1} parent=1 // pred_region
      _
    $region25: #{tpu_custom_call.1} parent=1 // pred_fallthru
      _
    // Predicated region
    $region26: #{tpu_custom_call.1} parent=1 // pred_check
      _
    $region27: #{tpu_custom_call.1} parent=1 // pred_check_branch
      %54 = sbr.rel (0) target = $region29
    $region28: #{tpu_custom_call.1} parent=1 // pred_region
      _
    $region29: #{tpu_custom_call.1} parent=1 // pred_fallthru
      _
    // Predicated region
    $region30: #{tpu_custom_call.1} parent=1 // pred_check
      _
    $region31: #{tpu_custom_call.1} parent=1 // pred_check_branch
      %56 = sbr.rel (0) target = $region33
    $region32: #{tpu_custom_call.1} parent=1 // pred_region
      %57 = dma.done [#allocation4], 64
    $region33: #{tpu_custom_call.1} parent=1 // pred_fallthru
      _
    // Predicated region
    $region34: #{tpu_custom_call.1} parent=1 // pred_check
      _
    $region35: #{tpu_custom_call.1} parent=1 // pred_check_branch
      %59 = sbr.rel (0) target = $region37
    $region36: #{tpu_custom_call.1} parent=1 // pred_region
      %60 = dma.done [#allocation7], 256
    $region37: #{tpu_custom_call.1} parent=1 // pred_fallthru
      _
    // Predicated region
    $region38: #{tpu_custom_call.1} parent=1 // pred_check
      _
    $region39: #{tpu_custom_call.1} parent=1 // pred_check_branch
      %62 = sbr.rel (0) target = $region41
    $region40: #{tpu_custom_call.1} parent=1 // pred_region
      %63 = dma.done [#allocation7], 16
    $region41: #{tpu_custom_call.1} parent=1 // pred_fallthru
      _
    %p65 = scmp.eq.s32.totalorder 0, 0
    // Predicated region
    $region42: #{tpu_custom_call.1} parent=1 // pred_check
      %p66 = pneg %p65
    $region43: #{tpu_custom_call.1} parent=1 // pred_check_branch
      %68 = sbr.rel (%p66) target = $region45
    $region44: #{tpu_custom_call.1} parent=1 // pred_region
      %v69 = vld [vmem:[#allocation3] sm:$0xf]
      %v70 = vld [vmem:[#allocation6] sm:$0xf]
      %v71 = vld [vmem:[#allocation6 + $0x4] sm:$0xf]
      %v72 = vld [vmem:[#allocation6 + $0x8] sm:$0xf]
      %v73 = vld [vmem:[#allocation6 + $0xc] sm:$0xf]
      %v74 = vld [vmem:[%s2] sm:$0x1]
      %v76 = vlaneseq
      %v77 = vshrl.u32 %v76, 7
      %v78 = vsub.s32 0, %v77
      %v79 = vrot.slane %v74, %v78
      %v85 = vunpack.c.l.b16 %v70
      %v86 = vunpack.c.l.b16 %v71
      %v87 = vunpack.c.l.b16 %v72
      %v88 = vunpack.c.l.b16 %v73
      %v89 = vpack.c.b16 %v86, %v85
      %v90 = vpack.c.b16 %v88, %v87
      %vm93 = vcmask 261120
      %v95 = vsel %vm93, %v69, 0
      %97 = vmatprep.subr.bf16.mxu0 0
      %98 = vmatpush1.bf16.msra.mxu0 %v89
      %99 = vmatprep.subr.bf16.mxu0 0
      %100 = vmatpush1.bf16.msra.mxu0 %v90
      %101 = vmatprep.subr.bf16.mxu0 0
      %102 = vmatpush1.bf16.msra.mxu0 0
      %103 = vmatprep.subr.bf16.mxu0 0
      %104 = vmatpush1.bf16.msra.mxu0 0
      %105 = vmatprep.subr.bf16.mxu0 0
      %106 = vmatpush1.bf16.msra.mxu0 0
      %107 = vmatprep.subr.bf16.mxu0 0
      %108 = vmatpush1.bf16.msra.mxu0 0
      %109 = vmatprep.subr.bf16.mxu0 0
      %110 = vmatpush1.bf16.msra.mxu0 0
      %111 = vmatprep.subr.bf16.mxu0 0
      %112 = vmatpush1.bf16.msra.mxu0 0
      %113 = vmatprep.subr.bf16.mxu0 0
      %114 = vmatpush1.bf16.msra.mxu0 0
      %115 = vmatprep.subr.bf16.mxu0 0
      %116 = vmatpush1.bf16.msra.mxu0 0
      %117 = vmatprep.subr.bf16.mxu0 0
      %118 = vmatpush1.bf16.msra.mxu0 0
      %119 = vmatprep.subr.bf16.mxu0 0
      %120 = vmatpush1.bf16.msra.mxu0 0
      %121 = vmatprep.subr.bf16.mxu0 0
      %122 = vmatpush1.bf16.msra.mxu0 0
      %123 = vmatprep.subr.bf16.mxu0 0
      %124 = vmatpush1.bf16.msra.mxu0 0
      %125 = vmatprep.subr.bf16.mxu0 0
      %126 = vmatpush1.bf16.msra.mxu0 0
      %127 = vmatprep.subr.bf16.mxu0 0
      %128 = vmatpush1.bf16.msra.mxu0 0
      %129 = vmatprep.mubr.bf16.mxu0 0
      %130 = vmatmul.mubr.bf16.gmra.mrb[0].mxu0 %v95
      %v131 = vpop.f32.mrb[0].mxu0
      %v132 = vadd.f32 %v79, %v131
      %v133 = vpop.f32.mrb[0].mxu0
      %v134 = vpop.f32.mrb[0].mxu0
      %v135 = vpop.f32.mrb[0].mxu0
      %136 = vdwg.mxu0
      %v137 = vmax.f32 %v132, 0.0
      %v138 = vsel %vm93, %v137, 0.0
      %139 = vadd.xlane.f32.xlu0 %v138
      %v140 = vpop.xlane.xlu0 %139
      %v141 = vrcp.pop 32.0
      %v142 = vmul.f32 %v140, %v141
      %v143 = vsub.f32 %v137, %v142
      %v144 = vmul.f32 %v143, %v143
      %v145 = vsel %vm93, %v144, 0.0
      %146 = vadd.xlane.f32.xlu0 %v145
      %v147 = vpop.xlane.xlu0 %146
      %v148 = vmul.f32 %v147, %v141
      %v149 = vadd.f32 %v148, 1e-05
      %v150 = vrsqrt.pop %v149
      %v151 = vmul.f32 %v143, %v150
      %v152 = vld [vmem:[%s3] sm:$0x1]
      %v154 = vlaneseq
      %v155 = vshrl.u32 %v154, 7
      %v156 = vsub.s32 0, %v155
      %v157 = vrot.slane %v152, %v156
      %v159 = vmul.f32 %v151, %v157
      %v160 = vld [vmem:[#allocation8] sm:$0x1]
      %v162 = vlaneseq
      %v163 = vshrl.u32 %v162, 7
      %v164 = vsub.s32 0, %v163
      %v165 = vrot.slane %v160, %v164
      %v167 = vadd.f32 %v159, %v165
      %v168 = vpack.c.bf16 %v167, %v167
      %vm169 = vcmask 257024
      %170 = vst.msk [vmem:[#allocation2] sm:$0xf] %vm169, %v168
    $region45: #{tpu_custom_call.1} parent=1 // pred_fallthru
      _
    %v171 = vld [vmem:[#allocation2] sm:$0xf]
    %v172 = vld [vmem:[%s5] sm:$0xf]
    %v173 = vld [vmem:[%s5 + $0x4] sm:$0xf]
    %v174 = vld [vmem:[%s5 + $0x8] sm:$0xf]
    %v175 = vld [vmem:[%s5 + $0xc] sm:$0xf]
    %v176 = vld [vmem:[%s6] sm:$0x1]
    %v178 = vlaneseq
    %v179 = vshrl.u32 %v178, 7
    %v180 = vsub.s32 0, %v179
    %v181 = vrot.slane %v176, %v180
    %v187 = vunpack.c.l.b16 %v172
    %v188 = vunpack.c.l.b16 %v173
    %v189 = vunpack.c.l.b16 %v174
    %v190 = vunpack.c.l.b16 %v175
    %v191 = vpack.c.b16 %v188, %v187
    %v192 = vpack.c.b16 %v190, %v189
    %vm195 = vcmask 261120
    %v197 = vsel %vm195, %v171, 0
    %199 = vmatprep.subr.bf16.mxu0 0
    %200 = vmatpush1.bf16.msra.mxu0 %v191
    %201 = vmatprep.subr.bf16.mxu0 0
    %202 = vmatpush1.bf16.msra.mxu0 %v192
    %203 = vmatprep.subr.bf16.mxu0 0
    %204 = vmatpush1.bf16.msra.mxu0 0
    %205 = vmatprep.subr.bf16.mxu0 0
    %206 = vmatpush1.bf16.msra.mxu0 0
    %207 = vmatprep.subr.bf16.mxu0 0
    %208 = vmatpush1.bf16.msra.mxu0 0
    %209 = vmatprep.subr.bf16.mxu0 0
    %210 = vmatpush1.bf16.msra.mxu0 0
    %211 = vmatprep.subr.bf16.mxu0 0
    %212 = vmatpush1.bf16.msra.mxu0 0
    %213 = vmatprep.subr.bf16.mxu0 0
    %214 = vmatpush1.bf16.msra.mxu0 0
    %215 = vmatprep.subr.bf16.mxu0 0
    %216 = vmatpush1.bf16.msra.mxu0 0
    %217 = vmatprep.subr.bf16.mxu0 0
    %218 = vmatpush1.bf16.msra.mxu0 0
    %219 = vmatprep.subr.bf16.mxu0 0
    %220 = vmatpush1.bf16.msra.mxu0 0
    %221 = vmatprep.subr.bf16.mxu0 0
    %222 = vmatpush1.bf16.msra.mxu0 0
    %223 = vmatprep.subr.bf16.mxu0 0
    %224 = vmatpush1.bf16.msra.mxu0 0
    %225 = vmatprep.subr.bf16.mxu0 0
    %226 = vmatpush1.bf16.msra.mxu0 0
    %227 = vmatprep.subr.bf16.mxu0 0
    %228 = vmatpush1.bf16.msra.mxu0 0
    %229 = vmatprep.subr.bf16.mxu0 0
    %230 = vmatpush1.bf16.msra.mxu0 0
    %231 = vmatprep.mubr.bf16.mxu0 0
    %232 = vmatmul.mubr.bf16.gmra.mrb[0].mxu0 %v197
    %v233 = vpop.f32.mrb[0].mxu0
    %v234 = vadd.f32 %v181, %v233
    %v235 = vpop.f32.mrb[0].mxu0
    %v236 = vpop.f32.mrb[0].mxu0
    %v237 = vpop.f32.mrb[0].mxu0
    %238 = vdwg.mxu0
    %239 = vst [vmem:[#allocation9] sm:$0xff] %v234
    // Predicated region
    $region46: #{tpu_custom_call.1} parent=1 // pred_check
      _
    $region47: #{tpu_custom_call.1} parent=1 // pred_check_branch
      %241 = sbr.rel (0) target = $region49
    $region48: #{tpu_custom_call.1} parent=1 // pred_region
      %s243 = ssub.s32 128, 128
      %244 = vsyncadd [#allocation5], %s243
      %s246 = sshll.u32 [#allocation9], 4
      %s247 = int_to_ptr.vmem [resolvable:$true] %s246
      %249 = dma.vmem_to_hbm [thread:$0]  %s247, 128, %s7, [#allocation5]
    $region49: #{tpu_custom_call.1} parent=1 // pred_fallthru
      _
    // Predicated region
    $region50: #{tpu_custom_call.1} parent=1 // pred_check
      _
    $region51: #{tpu_custom_call.1} parent=1 // pred_check_branch
      %251 = sbr.rel (0) target = $region53
    $region52: #{tpu_custom_call.1} parent=1 // pred_region
      %252 = dma.done [#allocation5], 128
    $region53: #{tpu_custom_call.1} parent=1 // pred_fallthru
      _
    %253 = vsyncpa [#allocation4], 1
    %254 = vsyncpa [#allocation7], 1
    %255 = vsyncpa [#allocation5], 1

</llo_original>
